<compile_context>
chip_gen: v7x
topology: tpu7x:2x2x1
jax: 0.10.0
libtpu: 0.0.40
codegen_flags: <defaults>
</compile_context>

<pallas_src>
import jax
import jax.numpy as jnp
from jax.experimental import pallas as pl
from jax.experimental.pallas import tpu as pltpu

# Batch tile: multiple of 8.  Recommended: >= 512 on v5e (amortize per-step
# overhead), multiples of 256 on v6e/v7x (match 256x256 MXU), and an even number
# of grid steps on v7x so both TensorCores get equal work.
_BLOCK_B = 256


def _round_up(a, m):
    return (a + m - 1) // m * m


def hybrid_kernel(x_ref, wg_ref, gc_ref, wa_ref, ba_ref, w2_ref, b2_ref,
                  w3_ref, b3_ref, out_ref):
    x = x_ref[...]                                             # [Bt, F] f32
    R = wg_ref.shape[1]

    # ---- ANFIS firing strengths (log space).  Kept in f32 / HIGHEST precision:
    #      the expansion x^2*gA + x*gB + gC cancels catastrophically in bf16
    #      when sigma is small.  K=2F, N=R -> negligible MXU cost. ----
    xc = jnp.concatenate([x * x, x], axis=1)                   # [Bt, 2F]
    E = jnp.dot(xc, wg_ref[...],
                preferred_element_type=jnp.float32,
                precision=jax.lax.Precision.HIGHEST) + gc_ref[...]   # [Bt, R]
    firing = jnp.exp(-E)
    inv = pl.reciprocal(jnp.sum(firing, axis=1, keepdims=True) + 1e-10,
                        approx=True)
    norm = firing * inv                                        # [Bt, R]

    # ---- fused bf16 matmul: MLP layer-1 pre-activation and ANFIS consequents ----
    xb = x.astype(jnp.bfloat16)
    t = jnp.dot(xb, wa_ref[...],
                preferred_element_type=jnp.float32) + ba_ref[...]    # [Bt, H1+R]
    H1 = t.shape[1] - R
    h1 = jnp.maximum(t[:, :H1], 0.0)                           # [Bt, H1]
    conseq = t[:, H1:]                                         # [Bt, R] (pre-scaled by w0)
    anfis = jnp.sum(norm * conseq, axis=1, keepdims=True)      # [Bt, 1]

    # ---- rest of DynamicMLP (dropout_rate = 0.0 -> identity); bf16 MXU operands,
    #      f32 epilogue (v5e VPU has no bf16).  w3/b3 carry the combine weight/bias. ----
    h2 = jnp.maximum(
        jnp.dot(h1.astype(jnp.bfloat16), w2_ref[...],
                preferred_element_type=jnp.float32) + b2_ref[...], 0.0)
    ann = jnp.dot(h2.astype(jnp.bfloat16), w3_ref[...],
                  preferred_element_type=jnp.float32) + b3_ref[...]  # [Bt, 1]

    out_ref[...] = anfis + ann                                 # [Bt, 1]


@jax.jit
def hybrid_forward(x, p):
    B, F = x.shape

    # --- trace-time parameter folding (constant-folded under jit) ---
    w0 = p["wc"][0, 0]          # combine weight on the ANFIS branch
    w1c = p["wc"][0, 1]         # combine weight on the MLP branch
    bc = p["bc"][0]             # combine bias

    gA = 1.0 / (2.0 * p["sigma"] ** 2)                          # [F, R]
    gB = -2.0 * p["mu"] * gA                                    # [F, R]
    gC = jnp.sum(p["mu"] ** 2 * gA, axis=0, keepdims=True)      # [1, R]
    wg = jnp.concatenate([gA, gB], axis=0)                      # [2F, R] f32

    conT = p["consequents"].T                                   # [F+1, R]
    conW = conT[:F, :] * w0                                     # [F, R]
    conB = conT[F:, :] * w0                                     # [1, R]

    # fused [w1 | conW]; H1 first so both static slices are lane-aligned (H1 % 128 == 0)
    wa = jnp.concatenate([p["w1"].T, conW], axis=1).astype(jnp.bfloat16)   # [F, H1+R]
    ba = jnp.concatenate([p["b1"].reshape(1, -1), conB], axis=1)           # [1, H1+R] f32

    w2 = p["w2"].T.astype(jnp.bfloat16)                         # [H1, H2]
    b2 = p["b2"].reshape(1, -1)                                 # [1, H2] f32
    w3 = (p["w3"].T * w1c).astype(jnp.bfloat16)                 # [H2, 1]
    b3 = (p["b3"] * w1c + bc).reshape(1, 1)                     # [1, 1] f32

    # --- batch grid: x / out blocked on batch, weights VMEM-resident ---
    Bt = min(_BLOCK_B, _round_up(B, 8))
    Bpad = _round_up(B, Bt)
    if Bpad != B:
        x = jnp.pad(x, ((0, Bpad - B), (0, 0)))

    const = lambda i: (0, 0)
    out = pl.pallas_call(
        hybrid_kernel,
        out_shape=jax.ShapeDtypeStruct((Bpad, 1), jnp.float32),
        grid=(Bpad // Bt,),
        in_specs=[
            pl.BlockSpec((Bt, F), lambda i: (i, 0)),
            pl.BlockSpec(wg.shape, const),
            pl.BlockSpec(gC.shape, const),
            pl.BlockSpec(wa.shape, const),
            pl.BlockSpec(ba.shape, const),
            pl.BlockSpec(w2.shape, const),
            pl.BlockSpec(b2.shape, const),
            pl.BlockSpec(w3.shape, const),
            pl.BlockSpec(b3.shape, const),
        ],
        out_specs=pl.BlockSpec((Bt, 1), lambda i: (i, 0)),
        compiler_params=pltpu.CompilerParams(
            dimension_semantics=("parallel",)),
    )(x, wg, gC, wa, ba, w2, b2, w3, b3)

    final = out[:B]
    attn = jnp.ones((B, 1), jnp.float32)   # softmax over a size-1 axis is exactly 1.0
    return final, attn


def reference_forward(x, p):
    """Pure-JAX mirror of the PyTorch forward (f32 gold reference)."""
    with jax.default_matmul_precision("highest"):
        h = jnp.tanh(x @ p["wa1"].T + p["ba1"])
        s = h @ p["wa2"].T + p["ba2"]
        attn = jax.nn.softmax(s, axis=1)
        xa = x * attn
        memb = jnp.exp(-((xa[:, :, None] - p["mu"][None]) ** 2)
                       / (2.0 * p["sigma"][None] ** 2))
        firing = jnp.prod(memb, axis=1)
        norm = firing / (jnp.sum(firing, axis=1, keepdims=True) + 1e-10)
        x_aug = jnp.concatenate([xa, jnp.ones((x.shape[0], 1), x.dtype)], axis=1)
        conseq = x_aug @ p["consequents"].T
        anfis = jnp.sum(norm * conseq, axis=1, keepdims=True)
        h1 = jax.nn.relu(xa @ p["w1"].T + p["b1"])
        h2 = jax.nn.relu(h1 @ p["w2"].T + p["b2"])
        ann = h2 @ p["w3"].T + p["b3"]
        comb = jnp.concatenate([anfis, ann], axis=1)
        final = comb @ p["wc"].T + p["bc"]
    return final, attn


def make_params(key, input_dim, hidden_dims, attention_dim, num_rules):
    def linear(k, fan_in, fan_out):
        k1, k2 = jax.random.split(k)
        bound = 1.0 / jnp.sqrt(jnp.float32(fan_in))
        w = jax.random.uniform(k1, (fan_out, fan_in), jnp.float32, -bound, bound)  # torch [out,in]
        b = jax.random.uniform(k2, (fan_out,), jnp.float32, -bound, bound)
        return w, b

    ks = jax.random.split(key, 9)
    p = {}
    p["wa1"], p["ba1"] = linear(ks[0], input_dim, attention_dim)
    p["wa2"], p["ba2"] = linear(ks[1], attention_dim, 1)
    p["mu"] = jax.random.normal(ks[2], (input_dim, num_rules), jnp.float32)
    p["sigma"] = jax.random.normal(ks[3], (input_dim, num_rules), jnp.float32)
    p["consequents"] = jax.random.normal(ks[4], (num_rules, input_dim + 1), jnp.float32)
    p["w1"], p["b1"] = linear(ks[5], input_dim, hidden_dims[0])
    p["w2"], p["b2"] = linear(ks[6], hidden_dims[0], hidden_dims[1])
    p["w3"], p["b3"] = linear(ks[7], hidden_dims[1], 1)
    p["wc"], p["bc"] = linear(ks[8], 2, 1)
    return p


if __name__ == "__main__":
    B, INPUT_DIM = 8, 16
    HIDDEN_DIMS = [256, 128]
    ATTN_DIM = 64
    NUM_RULES = 5

    key = jax.random.PRNGKey(0)
    kx, kp, kx2 = jax.random.split(key, 3)
    x = jax.random.normal(kx, (B, INPUT_DIM), jnp.float32)
    params = make_params(kp, INPUT_DIM, HIDDEN_DIMS, ATTN_DIM, NUM_RULES)

    # --- small-batch correctness check (single grid step) ---
    final_out, attn_w = hybrid_forward(x, params)
    final_out = jax.block_until_ready(final_out)
    attn_w = jax.block_until_ready(attn_w)

    ref_out, ref_attn = reference_forward(x, params)
    assert final_out.shape == (B, 1) and attn_w.shape == (B, 1)
    # bf16 MXU operands (per perf review) widen the error vs the f32 reference;
    # validate with a max-relative-error metric instead of a tight allclose.
    scale = jnp.maximum(jnp.max(jnp.abs(ref_out)), 1.0)
    rel_err = jnp.max(jnp.abs(final_out - ref_out)) / scale
    assert float(rel_err) < 3e-2, f"final output mismatch (rel err {float(rel_err)})"
    assert jnp.allclose(attn_w, ref_attn, atol=1e-6), "attention weights mismatch"

    # --- multi-step grid smoke test (pipelined batch tiles, even step count) ---
    B2 = 1024
    x2 = jax.random.normal(kx2, (B2, INPUT_DIM), jnp.float32)
    final2, attn2 = hybrid_forward(x2, params)
    final2 = jax.block_until_ready(final2)
    assert final2.shape == (B2, 1) and attn2.shape == (B2, 1)

    print("KERNEL_OK")
</pallas_src>

<mosaic_0001>
module attributes {stable_mosaic.version = 11 : i64} {
  func.func @hybrid_kernel(%arg0: i32, %arg1: memref<8x16xf32, #tpu.memory_space<vmem>>, %arg2: memref<32x5xf32, #tpu.memory_space<vmem>>, %arg3: memref<1x5xf32, #tpu.memory_space<vmem>>, %arg4: memref<16x261xbf16, #tpu.memory_space<vmem>>, %arg5: memref<1x261xf32, #tpu.memory_space<vmem>>, %arg6: memref<256x128xbf16, #tpu.memory_space<vmem>>, %arg7: memref<1x128xf32, #tpu.memory_space<vmem>>, %arg8: memref<128x1xbf16, #tpu.memory_space<vmem>>, %arg9: memref<1x1xf32, #tpu.memory_space<vmem>>, %arg10: memref<8x1xf32, #tpu.memory_space<vmem>>) attributes {dimension_semantics = [#tpu.dimension_semantics<parallel>], iteration_bounds = array<i64: 1>, scalar_prefetch = 0 : i64, scratch_operands = 0 : i64, tpu.core_type = #tpu.core_type<tc>, window_params = [{transform_indices = @transform_0, window_bounds = array<i64: 8, 16>}, {pipeline_mode = #tpu.pipeline_mode<synchronous>, transform_indices = @transform_1, window_bounds = array<i64: 32, 5>}, {pipeline_mode = #tpu.pipeline_mode<synchronous>, transform_indices = @transform_2, window_bounds = array<i64: 1, 5>}, {pipeline_mode = #tpu.pipeline_mode<synchronous>, transform_indices = @transform_3, window_bounds = array<i64: 16, 261>}, {pipeline_mode = #tpu.pipeline_mode<synchronous>, transform_indices = @transform_4, window_bounds = array<i64: 1, 261>}, {pipeline_mode = #tpu.pipeline_mode<synchronous>, transform_indices = @transform_5, window_bounds = array<i64: 256, 128>}, {pipeline_mode = #tpu.pipeline_mode<synchronous>, transform_indices = @transform_6, window_bounds = array<i64: 1, 128>}, {pipeline_mode = #tpu.pipeline_mode<synchronous>, transform_indices = @transform_7, window_bounds = array<i64: 128, 1>}, {pipeline_mode = #tpu.pipeline_mode<synchronous>, transform_indices = @transform_8, window_bounds = array<i64: 1, 1>}, {transform_indices = @transform_9, window_bounds = array<i64: 8, 1>}]} {
    %c0 = arith.constant 0 : index
    %c0_0 = arith.constant 0 : index
    %0 = vector.load %arg1[%c0, %c0_0] : memref<8x16xf32, #tpu.memory_space<vmem>>, vector<8x16xf32>
    %1 = arith.mulf %0, %0 : vector<8x16xf32>
    %2 = tpu.concatenate %1, %0 in 1 : vector<8x16xf32>, vector<8x16xf32> -> vector<8x32xf32>
    %c0_1 = arith.constant 0 : index
    %c0_2 = arith.constant 0 : index
    %3 = vector.load %arg2[%c0_1, %c0_2] : memref<32x5xf32, #tpu.memory_space<vmem>>, vector<32x5xf32>
    %cst = arith.constant dense<0.000000e+00> : vector<8x5xf32>
    %4 = tpu.matmul %2, %3, %cst {dimension_numbers = #tpu.dot_dimension_numbers<[1], [0], [0], [1], [0, 0, 1, 1], [], []>, precision = #tpu.contract_precision<fp32>} : vector<8x32xf32>, vector<32x5xf32>, vector<8x5xf32> -> vector<8x5xf32>
    %c0_3 = arith.constant 0 : index
    %c0_4 = arith.constant 0 : index
    %5 = vector.load %arg3[%c0_3, %c0_4] : memref<1x5xf32, #tpu.memory_space<vmem>>, vector<1x5xf32>
    %6 = vector.broadcast %5 : vector<1x5xf32> to vector<8x5xf32>
    %7 = arith.addf %4, %6 : vector<8x5xf32>
    %cst_5 = arith.constant 0.000000e+00 : f32
    %8 = vector.broadcast %cst_5 : f32 to vector<8x5xf32>
    %9 = arith.subf %8, %7 : vector<8x5xf32>
    %10 = math.exp %9 : vector<8x5xf32>
    %cst_6 = arith.constant dense<0.000000e+00> : vector<8xf32>
    %11 = vector.multi_reduction <add>, %10, %cst_6 [1] : vector<8x5xf32> to vector<8xf32>
    %12 = vector.shape_cast %11 : vector<8xf32> to vector<8x1xf32>
    %cst_7 = arith.constant 1.000000e-10 : f32
    %13 = vector.broadcast %cst_7 : f32 to vector<8x1xf32>
    %14 = arith.addf %12, %13 : vector<8x1xf32>
    %15 = tpu.reciprocal %14 {approx = true} : vector<8x1xf32> -> vector<8x1xf32>
    %16 = vector.broadcast %15 : vector<8x1xf32> to vector<8x5xf32>
    %17 = arith.mulf %10, %16 : vector<8x5xf32>
    %18 = arith.truncf %0 : vector<8x16xf32> to vector<8x16xbf16>
    %c0_8 = arith.constant 0 : index
    %c0_9 = arith.constant 0 : index
    %19 = vector.load %arg4[%c0_8, %c0_9] : memref<16x261xbf16, #tpu.memory_space<vmem>>, vector<16x261xbf16>
    %cst_10 = arith.constant dense<0.000000e+00> : vector<8x261xf32>
    %20 = tpu.matmul %18, %19, %cst_10 {dimension_numbers = #tpu.dot_dimension_numbers<[1], [0], [0], [1], [0, 0, 1, 1], [], []>} : vector<8x16xbf16>, vector<16x261xbf16>, vector<8x261xf32> -> vector<8x261xf32>
    %c0_11 = arith.constant 0 : index
    %c0_12 = arith.constant 0 : index
    %21 = vector.load %arg5[%c0_11, %c0_12] : memref<1x261xf32, #tpu.memory_space<vmem>>, vector<1x261xf32>
    %22 = vector.broadcast %21 : vector<1x261xf32> to vector<8x261xf32>
    %23 = arith.addf %20, %22 : vector<8x261xf32>
    %24 = vector.extract_strided_slice %23 {offsets = [0, 0], sizes = [8, 256], strides = [1, 1]} : vector<8x261xf32> to vector<8x256xf32>
    %cst_13 = arith.constant 0.000000e+00 : f32
    %25 = vector.broadcast %cst_13 : f32 to vector<8x256xf32>
    %26 = arith.maximumf %24, %25 : vector<8x256xf32>
    %27 = vector.extract_strided_slice %23 {offsets = [0, 256], sizes = [8, 5], strides = [1, 1]} : vector<8x261xf32> to vector<8x5xf32>
    %28 = arith.mulf %17, %27 : vector<8x5xf32>
    %cst_14 = arith.constant dense<0.000000e+00> : vector<8xf32>
    %29 = vector.multi_reduction <add>, %28, %cst_14 [1] : vector<8x5xf32> to vector<8xf32>
    %30 = vector.shape_cast %29 : vector<8xf32> to vector<8x1xf32>
    %31 = arith.truncf %26 : vector<8x256xf32> to vector<8x256xbf16>
    %c0_15 = arith.constant 0 : index
    %c0_16 = arith.constant 0 : index
    %32 = vector.load %arg6[%c0_15, %c0_16] : memref<256x128xbf16, #tpu.memory_space<vmem>>, vector<256x128xbf16>
    %cst_17 = arith.constant dense<0.000000e+00> : vector<8x128xf32>
    %33 = tpu.matmul %31, %32, %cst_17 {dimension_numbers = #tpu.dot_dimension_numbers<[1], [0], [0], [1], [0, 0, 1, 1], [], []>} : vector<8x256xbf16>, vector<256x128xbf16>, vector<8x128xf32> -> vector<8x128xf32>
    %c0_18 = arith.constant 0 : index
    %c0_19 = arith.constant 0 : index
    %34 = vector.load %arg7[%c0_18, %c0_19] : memref<1x128xf32, #tpu.memory_space<vmem>>, vector<1x128xf32>
    %35 = vector.broadcast %34 : vector<1x128xf32> to vector<8x128xf32>
    %36 = arith.addf %33, %35 : vector<8x128xf32>
    %cst_20 = arith.constant 0.000000e+00 : f32
    %37 = vector.broadcast %cst_20 : f32 to vector<8x128xf32>
    %38 = arith.maximumf %36, %37 : vector<8x128xf32>
    %39 = arith.truncf %38 : vector<8x128xf32> to vector<8x128xbf16>
    %c0_21 = arith.constant 0 : index
    %c0_22 = arith.constant 0 : index
    %40 = vector.load %arg8[%c0_21, %c0_22] : memref<128x1xbf16, #tpu.memory_space<vmem>>, vector<128x1xbf16>
    %cst_23 = arith.constant dense<0.000000e+00> : vector<8x1xf32>
    %41 = tpu.matmul %39, %40, %cst_23 {dimension_numbers = #tpu.dot_dimension_numbers<[1], [0], [0], [1], [0, 0, 1, 1], [], []>} : vector<8x128xbf16>, vector<128x1xbf16>, vector<8x1xf32> -> vector<8x1xf32>
    %c0_24 = arith.constant 0 : index
    %c0_25 = arith.constant 0 : index
    %42 = vector.load %arg9[%c0_24, %c0_25] : memref<1x1xf32, #tpu.memory_space<vmem>>, vector<1x1xf32>
    %43 = vector.broadcast %42 : vector<1x1xf32> to vector<8x1xf32>
    %44 = arith.addf %41, %43 : vector<8x1xf32>
    %45 = arith.addf %30, %44 : vector<8x1xf32>
    %c0_26 = arith.constant 0 : index
    %c0_27 = arith.constant 0 : index
    %46 = vector.load %arg10[%c0_26, %c0_27] : memref<8x1xf32, #tpu.memory_space<vmem>>, vector<8x1xf32>
    tpu.vector_store %arg10[%c0_26, %c0_27], %45 {strides = array<i32>} : memref<8x1xf32, #tpu.memory_space<vmem>>, vector<8x1xf32>,
    return
  }
  func.func @transform_0(%arg0: i32) -> (i32, i32) {
    %c0_i32 = arith.constant 0 : i32
    %c0_i32_0 = arith.constant 0 : i32
    return %arg0, %c0_i32 : i32, i32
  }
  func.func @transform_1(%arg0: i32) -> (i32, i32) {
    %c0_i32 = arith.constant 0 : i32
    %c0_i32_0 = arith.constant 0 : i32
    %c0_i32_1 = arith.constant 0 : i32
    return %c0_i32, %c0_i32_0 : i32, i32
  }
  func.func @transform_2(%arg0: i32) -> (i32, i32) {
    %c0_i32 = arith.constant 0 : i32
    %c0_i32_0 = arith.constant 0 : i32
    %c0_i32_1 = arith.constant 0 : i32
    return %c0_i32, %c0_i32_0 : i32, i32
  }
  func.func @transform_3(%arg0: i32) -> (i32, i32) {
    %c0_i32 = arith.constant 0 : i32
    %c0_i32_0 = arith.constant 0 : i32
    %c0_i32_1 = arith.constant 0 : i32
    return %c0_i32, %c0_i32_0 : i32, i32
  }
  func.func @transform_4(%arg0: i32) -> (i32, i32) {
    %c0_i32 = arith.constant 0 : i32
    %c0_i32_0 = arith.constant 0 : i32
    %c0_i32_1 = arith.constant 0 : i32
    return %c0_i32, %c0_i32_0 : i32, i32
  }
  func.func @transform_5(%arg0: i32) -> (i32, i32) {
    %c0_i32 = arith.constant 0 : i32
    %c0_i32_0 = arith.constant 0 : i32
    %c0_i32_1 = arith.constant 0 : i32
    return %c0_i32, %c0_i32_0 : i32, i32
  }
  func.func @transform_6(%arg0: i32) -> (i32, i32) {
    %c0_i32 = arith.constant 0 : i32
    %c0_i32_0 = arith.constant 0 : i32
    %c0_i32_1 = arith.constant 0 : i32
    return %c0_i32, %c0_i32_0 : i32, i32
  }
  func.func @transform_7(%arg0: i32) -> (i32, i32) {
    %c0_i32 = arith.constant 0 : i32
    %c0_i32_0 = arith.constant 0 : i32
    %c0_i32_1 = arith.constant 0 : i32
    return %c0_i32, %c0_i32_0 : i32, i32
  }
  func.func @transform_8(%arg0: i32) -> (i32, i32) {
    %c0_i32 = arith.constant 0 : i32
    %c0_i32_0 = arith.constant 0 : i32
    %c0_i32_1 = arith.constant 0 : i32
    return %c0_i32, %c0_i32_0 : i32, i32
  }
  func.func @transform_9(%arg0: i32) -> (i32, i32) {
    %c0_i32 = arith.constant 0 : i32
    %c0_i32_0 = arith.constant 0 : i32
    return %arg0, %c0_i32 : i32, i32
  }
}

</mosaic_0001>

<llo_original>
// kernel: hybrid_forward.1
$region0: #{hybrid_forward.1}
  #allocation0 [shape = 'u32[]', space=smem, size = 0x4, offset = 0x4, fixed_abs, tag = 'smem constant byte address 0x4 - core index']
  #allocation1 [shape = 'u32[144,128]{1,0:T(1,128)}', space=vmem, size = 0x12000, scoped, tag = 'internal scratch']
  #allocation2 [shape = 'f32[1,1]{1,0:T(1,128)S(1)}', space=vmem, size = 0x200, scoped, tag = 'scoped memory for hybrid_forward.1']
  %s0 = inlined_call_operand.vmem [shape: f32[8,16], index: 0, kind: input, shape index: {}]
  %s1 = inlined_call_operand.vmem [shape: f32[32,5], index: 1, kind: input, shape index: {}]
  %s2 = inlined_call_operand.vmem [shape: f32[1,5], index: 2, kind: input, shape index: {}]
  %s3 = inlined_call_operand.vmem [shape: bf16[16,261], index: 3, kind: input, shape index: {}]
  %s4 = inlined_call_operand.vmem [shape: f32[1,261], index: 4, kind: input, shape index: {}]
  %s5 = inlined_call_operand.vmem [shape: bf16[256,128], index: 5, kind: input, shape index: {}]
  %s6 = inlined_call_operand.vmem [shape: f32[1,128], index: 6, kind: input, shape index: {}]
  %s7 = inlined_call_operand.vmem [shape: bf16[128,1], index: 7, kind: input, shape index: {}]
  %s8 = inlined_call_operand.<no memory space> [shape: f32[1,1], index: 8, kind: input, shape index: {}]
  %s9 = inlined_call_operand.vmem [shape: f32[8,1], index: 9, kind: output, shape index: {}]
  %s10 = sld [smem:[#allocation0]]
  $region46: #{hybrid_forward.1} parent=0
    _
  %s12 = ssub.s32 1, %s10
  %s13 = scalar_select 0, %s12, %s10
  %v14 = vstv %s8
  %15 = vst [vmem:[#allocation2] sm:$0x1] %v14
  // Predicated region
  $region2: #{hybrid_forward.1} parent=0 // pred_check
    _
  $region3: #{hybrid_forward.1} parent=0 // pred_check_branch
    %17 = sbr.rel (0) target = $region5
  $region4: #{hybrid_forward.1} parent=0 // pred_region
    _
  $region5: #{hybrid_forward.1} parent=0 // pred_fallthru
    _
  // Predicated region
  $region6: #{hybrid_forward.1} parent=0 // pred_check
    _
  $region7: #{hybrid_forward.1} parent=0 // pred_check_branch
    %19 = sbr.rel (0) target = $region9
  $region8: #{hybrid_forward.1} parent=0 // pred_region
    _
  $region9: #{hybrid_forward.1} parent=0 // pred_fallthru
    _
  // Predicated region
  $region10: #{hybrid_forward.1} parent=0 // pred_check
    _
  $region11: #{hybrid_forward.1} parent=0 // pred_check_branch
    %21 = sbr.rel (0) target = $region13
  $region12: #{hybrid_forward.1} parent=0 // pred_region
    _
  $region13: #{hybrid_forward.1} parent=0 // pred_fallthru
    _
  // Predicated region
  $region14: #{hybrid_forward.1} parent=0 // pred_check
    _
  $region15: #{hybrid_forward.1} parent=0 // pred_check_branch
    %23 = sbr.rel (0) target = $region17
  $region16: #{hybrid_forward.1} parent=0 // pred_region
    _
  $region17: #{hybrid_forward.1} parent=0 // pred_fallthru
    _
  // Predicated region
  $region18: #{hybrid_forward.1} parent=0 // pred_check
    _
  $region19: #{hybrid_forward.1} parent=0 // pred_check_branch
    %25 = sbr.rel (0) target = $region21
  $region20: #{hybrid_forward.1} parent=0 // pred_region
    _
  $region21: #{hybrid_forward.1} parent=0 // pred_fallthru
    _
  // Predicated region
  $region22: #{hybrid_forward.1} parent=0 // pred_check
    _
  $region23: #{hybrid_forward.1} parent=0 // pred_check_branch
    %27 = sbr.rel (0) target = $region25
  $region24: #{hybrid_forward.1} parent=0 // pred_region
    _
  $region25: #{hybrid_forward.1} parent=0 // pred_fallthru
    _
  // Predicated region
  $region26: #{hybrid_forward.1} parent=0 // pred_check
    _
  $region27: #{hybrid_forward.1} parent=0 // pred_check_branch
    %29 = sbr.rel (0) target = $region29
  $region28: #{hybrid_forward.1} parent=0 // pred_region
    _
  $region29: #{hybrid_forward.1} parent=0 // pred_fallthru
    _
  // Predicated region
  $region30: #{hybrid_forward.1} parent=0 // pred_check
    _
  $region31: #{hybrid_forward.1} parent=0 // pred_check_branch
    %31 = sbr.rel (0) target = $region33
  $region32: #{hybrid_forward.1} parent=0 // pred_region
    _
  $region33: #{hybrid_forward.1} parent=0 // pred_fallthru
    _
  // Predicated region
  $region34: #{hybrid_forward.1} parent=0 // pred_check
    _
  $region35: #{hybrid_forward.1} parent=0 // pred_check_branch
    %33 = sbr.rel (0) target = $region37
  $region36: #{hybrid_forward.1} parent=0 // pred_region
    _
  $region37: #{hybrid_forward.1} parent=0 // pred_fallthru
    _
  %v35 = vld [vmem:[%s0] sm:$0xff]
  %v36 = vmul.f32 %v35, %v35
  %38 = vrot.lane.b32.xlu0 %v35, 16
  %v39 = vpop.permute.xlu0 %38
  %vm41 = vcmask 130048
  %v42 = vsel %vm41, %v36, %v39
  %v43 = vld [vmem:[%s1] sm:$0xff]
  %v44 = vld [vmem:[%s1 + $0x8] sm:$0xff]
  %v45 = vld [vmem:[%s1 + $0x10] sm:$0xff]
  %v46 = vld [vmem:[%s1 + $0x18] sm:$0xff]
  %v47 = vld [vmem:[%s2] sm:$0x1]
  %v49 = vlaneseq
  %v50 = vshrl.u32 %v49, 7
  %v51 = vsub.s32 0, %v50
  %v52 = vrot.slane %v47, %v51
  %vm54 = vcmask 261120
  %v56 = vsel %vm54, %v42, 0
  %58 = vmatprep.subr.mxu0 0.0
  %v59 = vand.u32 %v43, 4294901760
  %60 = vmatpush1.msra.mxu0 %v59
  %61 = vmatprep.subr.mxu0 0.0
  %v62 = vand.u32 %v44, 4294901760
  %63 = vmatpush1.msra.mxu0 %v62
  %64 = vmatprep.subr.mxu0 0.0
  %v65 = vand.u32 %v45, 4294901760
  %66 = vmatpush1.msra.mxu0 %v65
  %67 = vmatprep.subr.mxu0 0.0
  %v68 = vand.u32 %v46, 4294901760
  %69 = vmatpush1.msra.mxu0 %v68
  %70 = vmatprep.subr.mxu0 0.0
  %71 = vmatpush1.msra.mxu0 0.0
  %72 = vmatprep.subr.mxu0 0.0
  %73 = vmatpush1.msra.mxu0 0.0
  %74 = vmatprep.subr.mxu0 0.0
  %75 = vmatpush1.msra.mxu0 0.0
  %76 = vmatprep.subr.mxu0 0.0
  %77 = vmatpush1.msra.mxu0 0.0
  %78 = vmatprep.subr.mxu0 0.0
  %79 = vmatpush1.msra.mxu0 0.0
  %80 = vmatprep.subr.mxu0 0.0
  %81 = vmatpush1.msra.mxu0 0.0
  %82 = vmatprep.subr.mxu0 0.0
  %83 = vmatpush1.msra.mxu0 0.0
  %84 = vmatprep.subr.mxu0 0.0
  %85 = vmatpush1.msra.mxu0 0.0
  %86 = vmatprep.subr.mxu0 0.0
  %87 = vmatpush1.msra.mxu0 0.0
  %88 = vmatprep.subr.mxu0 0.0
  %89 = vmatpush1.msra.mxu0 0.0
  %90 = vmatprep.subr.mxu0 0.0
  %91 = vmatpush1.msra.mxu0 0.0
  %92 = vmatprep.subr.mxu0 0.0
  %93 = vmatpush1.msra.mxu0 0.0
  %94 = vmatprep.subr.mxu0 0.0
  %95 = vmatpush1.msra.mxu0 0.0
  %96 = vmatprep.subr.mxu0 0.0
  %97 = vmatpush1.msra.mxu0 0.0
  %98 = vmatprep.subr.mxu0 0.0
  %99 = vmatpush1.msra.mxu0 0.0
  %100 = vmatprep.subr.mxu0 0.0
  %101 = vmatpush1.msra.mxu0 0.0
  %102 = vmatprep.subr.mxu0 0.0
  %103 = vmatpush1.msra.mxu0 0.0
  %104 = vmatprep.subr.mxu0 0.0
  %105 = vmatpush1.msra.mxu0 0.0
  %106 = vmatprep.subr.mxu0 0.0
  %107 = vmatpush1.msra.mxu0 0.0
  %108 = vmatprep.subr.mxu0 0.0
  %109 = vmatpush1.msra.mxu0 0.0
  %110 = vmatprep.subr.mxu0 0.0
  %111 = vmatpush1.msra.mxu0 0.0
  %112 = vmatprep.subr.mxu0 0.0
  %113 = vmatpush1.msra.mxu0 0.0
  %114 = vmatprep.subr.mxu0 0.0
  %115 = vmatpush1.msra.mxu0 0.0
  %116 = vmatprep.subr.mxu0 0.0
  %117 = vmatpush1.msra.mxu0 0.0
  %118 = vmatprep.subr.mxu0 0.0
  %119 = vmatpush1.msra.mxu0 0.0
  %120 = vmatprep.subr.mxu0 0.0
  %121 = vmatpush1.msra.mxu0 0.0
  %122 = vmatprep.subr.mxu0 0.0
  %123 = vmatpush1.msra.mxu0 0.0
  %124 = vmatprep.subr.mxu0 0.0
  %125 = vmatpush1.msra.mxu0 0.0
  %126 = vmatprep.mubr.f32.mxu0 0.0
  %v127 = vand.u32 %v56, 4294901760
  %v128 = vsub.f32 %v56, %v127
  %v129 = vand.u32 %v128, 4294901760
  %v130 = vsub.f32 %v128, %v129
  %v131 = vand.u32 %v130, 4294901760
  %132 = vmatmul.mubr.f32.gmra.mrb[0].mxu0 %v131
  %v133 = vpop.f32.mrb[0].mxu0
  %v134 = vadd.f32 %v52, %v133
  %v135 = vpop.f32.mrb[0].mxu0
  %136 = vdwg.mxu0
  %137 = vmatprep.subr.mxu0 0.0
  %v138 = vand.u32 %v43, 4294901760
  %v139 = vsub.f32 %v43, %v138
  %v140 = vand.u32 %v139, 4294901760
  %v141 = vsub.f32 %v139, %v140
  %v142 = vand.u32 %v141, 4294901760
  %143 = vmatpush1.msra.mxu0 %v142
  %144 = vmatprep.subr.mxu0 0.0
  %v145 = vand.u32 %v44, 4294901760
  %v146 = vsub.f32 %v44, %v145
  %v147 = vand.u32 %v146, 4294901760
  %v148 = vsub.f32 %v146, %v147
  %v149 = vand.u32 %v148, 4294901760
  %150 = vmatpush1.msra.mxu0 %v149
  %151 = vmatprep.subr.mxu0 0.0
  %v152 = vand.u32 %v45, 4294901760
  %v153 = vsub.f32 %v45, %v152
  %v154 = vand.u32 %v153, 4294901760
  %v155 = vsub.f32 %v153, %v154
  %v156 = vand.u32 %v155, 4294901760
  %157 = vmatpush1.msra.mxu0 %v156
  %158 = vmatprep.subr.mxu0 0.0
  %v159 = vand.u32 %v46, 4294901760
  %v160 = vsub.f32 %v46, %v159
  %v161 = vand.u32 %v160, 4294901760
  %v162 = vsub.f32 %v160, %v161
  %v163 = vand.u32 %v162, 4294901760
  %164 = vmatpush1.msra.mxu0 %v163
  %165 = vmatprep.subr.mxu0 0.0
  %166 = vmatpush1.msra.mxu0 0.0
  %167 = vmatprep.subr.mxu0 0.0
  %168 = vmatpush1.msra.mxu0 0.0
  %169 = vmatprep.subr.mxu0 0.0
  %170 = vmatpush1.msra.mxu0 0.0
  %171 = vmatprep.subr.mxu0 0.0
  %172 = vmatpush1.msra.mxu0 0.0
  %173 = vmatprep.subr.mxu0 0.0
  %174 = vmatpush1.msra.mxu0 0.0
  %175 = vmatprep.subr.mxu0 0.0
  %176 = vmatpush1.msra.mxu0 0.0
  %177 = vmatprep.subr.mxu0 0.0
  %178 = vmatpush1.msra.mxu0 0.0
  %179 = vmatprep.subr.mxu0 0.0
  %180 = vmatpush1.msra.mxu0 0.0
  %181 = vmatprep.subr.mxu0 0.0
  %182 = vmatpush1.msra.mxu0 0.0
  %183 = vmatprep.subr.mxu0 0.0
  %184 = vmatpush1.msra.mxu0 0.0
  %185 = vmatprep.subr.mxu0 0.0
  %186 = vmatpush1.msra.mxu0 0.0
  %187 = vmatprep.subr.mxu0 0.0
  %188 = vmatpush1.msra.mxu0 0.0
  %189 = vmatprep.subr.mxu0 0.0
  %190 = vmatpush1.msra.mxu0 0.0
  %191 = vmatprep.subr.mxu0 0.0
  %192 = vmatpush1.msra.mxu0 0.0
  %193 = vmatprep.subr.mxu0 0.0
  %194 = vmatpush1.msra.mxu0 0.0
  %195 = vmatprep.subr.mxu0 0.0
  %196 = vmatpush1.msra.mxu0 0.0
  %197 = vmatprep.subr.mxu0 0.0
  %198 = vmatpush1.msra.mxu0 0.0
  %199 = vmatprep.subr.mxu0 0.0
  %200 = vmatpush1.msra.mxu0 0.0
  %201 = vmatprep.subr.mxu0 0.0
  %202 = vmatpush1.msra.mxu0 0.0
  %203 = vmatprep.subr.mxu0 0.0
  %204 = vmatpush1.msra.mxu0 0.0
  %205 = vmatprep.subr.mxu0 0.0
  %206 = vmatpush1.msra.mxu0 0.0
  %207 = vmatprep.subr.mxu0 0.0
  %208 = vmatpush1.msra.mxu0 0.0
  %209 = vmatprep.subr.mxu0 0.0
  %210 = vmatpush1.msra.mxu0 0.0
  %211 = vmatprep.subr.mxu0 0.0
  %212 = vmatpush1.msra.mxu0 0.0
  %213 = vmatprep.subr.mxu0 0.0
  %214 = vmatpush1.msra.mxu0 0.0
  %215 = vmatprep.subr.mxu0 0.0
  %216 = vmatpush1.msra.mxu0 0.0
  %217 = vmatprep.subr.mxu0 0.0
  %218 = vmatpush1.msra.mxu0 0.0
  %219 = vmatprep.subr.mxu0 0.0
  %220 = vmatpush1.msra.mxu0 0.0
  %221 = vmatprep.mubr.f32.mxu0 0.0
  %v222 = vand.u32 %v56, 4294901760
  %223 = vmatmul.mubr.f32.gmra.mrb[0].mxu0 %v222
  %v224 = vpop.f32.mrb[0].mxu0
  %v225 = vadd.f32 %v134, %v224
  %v226 = vpop.f32.mrb[0].mxu0
  %227 = vdwg.mxu0
  %228 = vmatprep.subr.mxu0 0.0
  %v229 = vand.u32 %v43, 4294901760
  %v230 = vsub.f32 %v43, %v229
  %231 = vmatpush1.msra.mxu0 %v230
  %232 = vmatprep.subr.mxu0 0.0
  %v233 = vand.u32 %v44, 4294901760
  %v234 = vsub.f32 %v44, %v233
  %235 = vmatpush1.msra.mxu0 %v234
  %236 = vmatprep.subr.mxu0 0.0
  %v237 = vand.u32 %v45, 4294901760
  %v238 = vsub.f32 %v45, %v237
  %239 = vmatpush1.msra.mxu0 %v238
  %240 = vmatprep.subr.mxu0 0.0
  %v241 = vand.u32 %v46, 4294901760
  %v242 = vsub.f32 %v46, %v241
  %243 = vmatpush1.msra.mxu0 %v242
  %244 = vmatprep.subr.mxu0 0.0
  %245 = vmatpush1.msra.mxu0 0.0
  %246 = vmatprep.subr.mxu0 0.0
  %247 = vmatpush1.msra.mxu0 0.0
  %248 = vmatprep.subr.mxu0 0.0
  %249 = vmatpush1.msra.mxu0 0.0
  %250 = vmatprep.subr.mxu0 0.0
  %251 = vmatpush1.msra.mxu0 0.0
  %252 = vmatprep.subr.mxu0 0.0
  %253 = vmatpush1.msra.mxu0 0.0
  %254 = vmatprep.subr.mxu0 0.0
  %255 = vmatpush1.msra.mxu0 0.0
  %256 = vmatprep.subr.mxu0 0.0
  %257 = vmatpush1.msra.mxu0 0.0
  %258 = vmatprep.subr.mxu0 0.0
  %259 = vmatpush1.msra.mxu0 0.0
  %260 = vmatprep.subr.mxu0 0.0
  %261 = vmatpush1.msra.mxu0 0.0
  %262 = vmatprep.subr.mxu0 0.0
  %263 = vmatpush1.msra.mxu0 0.0
  %264 = vmatprep.subr.mxu0 0.0
  %265 = vmatpush1.msra.mxu0 0.0
  %266 = vmatprep.subr.mxu0 0.0
  %267 = vmatpush1.msra.mxu0 0.0
  %268 = vmatprep.subr.mxu0 0.0
  %269 = vmatpush1.msra.mxu0 0.0
  %270 = vmatprep.subr.mxu0 0.0
  %271 = vmatpush1.msra.mxu0 0.0
  %272 = vmatprep.subr.mxu0 0.0
  %273 = vmatpush1.msra.mxu0 0.0
  %274 = vmatprep.subr.mxu0 0.0
  %275 = vmatpush1.msra.mxu0 0.0
  %276 = vmatprep.subr.mxu0 0.0
  %277 = vmatpush1.msra.mxu0 0.0
  %278 = vmatprep.subr.mxu0 0.0
  %279 = vmatpush1.msra.mxu0 0.0
  %280 = vmatprep.subr.mxu0 0.0
  %281 = vmatpush1.msra.mxu0 0.0
  %282 = vmatprep.subr.mxu0 0.0
  %283 = vmatpush1.msra.mxu0 0.0
  %284 = vmatprep.subr.mxu0 0.0
  %285 = vmatpush1.msra.mxu0 0.0
  %286 = vmatprep.subr.mxu0 0.0
  %287 = vmatpush1.msra.mxu0 0.0
  %288 = vmatprep.subr.mxu0 0.0
  %289 = vmatpush1.msra.mxu0 0.0
  %290 = vmatprep.subr.mxu0 0.0
  %291 = vmatpush1.msra.mxu0 0.0
  %292 = vmatprep.subr.mxu0 0.0
  %293 = vmatpush1.msra.mxu0 0.0
  %294 = vmatprep.subr.mxu0 0.0
  %295 = vmatpush1.msra.mxu0 0.0
  %296 = vmatprep.subr.mxu0 0.0
  %297 = vmatpush1.msra.mxu0 0.0
  %298 = vmatprep.subr.mxu0 0.0
  %299 = vmatpush1.msra.mxu0 0.0
  %300 = vmatprep.mubr.f32.mxu0 0.0
  %v301 = vand.u32 %v56, 4294901760
  %v302 = vsub.f32 %v56, %v301
  %303 = vmatmul.mubr.f32.gmra.mrb[0].mxu0 %v302
  %v304 = vpop.f32.mrb[0].mxu0
  %v305 = vadd.f32 %v225, %v304
  %v306 = vpop.f32.mrb[0].mxu0
  %307 = vdwg.mxu0
  %308 = vmatprep.subr.mxu0 0.0
  %v309 = vand.u32 %v43, 4294901760
  %310 = vmatpush1.msra.mxu0 %v309
  %311 = vmatprep.subr.mxu0 0.0
  %v312 = vand.u32 %v44, 4294901760
  %313 = vmatpush1.msra.mxu0 %v312
  %314 = vmatprep.subr.mxu0 0.0
  %v315 = vand.u32 %v45, 4294901760
  %316 = vmatpush1.msra.mxu0 %v315
  %317 = vmatprep.subr.mxu0 0.0
  %v318 = vand.u32 %v46, 4294901760
  %319 = vmatpush1.msra.mxu0 %v318
  %320 = vmatprep.subr.mxu0 0.0
  %321 = vmatpush1.msra.mxu0 0.0
  %322 = vmatprep.subr.mxu0 0.0
  %323 = vmatpush1.msra.mxu0 0.0
  %324 = vmatprep.subr.mxu0 0.0
  %325 = vmatpush1.msra.mxu0 0.0
  %326 = vmatprep.subr.mxu0 0.0
  %327 = vmatpush1.msra.mxu0 0.0
  %328 = vmatprep.subr.mxu0 0.0
  %329 = vmatpush1.msra.mxu0 0.0
  %330 = vmatprep.subr.mxu0 0.0
  %331 = vmatpush1.msra.mxu0 0.0
  %332 = vmatprep.subr.mxu0 0.0
  %333 = vmatpush1.msra.mxu0 0.0
  %334 = vmatprep.subr.mxu0 0.0
  %335 = vmatpush1.msra.mxu0 0.0
  %336 = vmatprep.subr.mxu0 0.0
  %337 = vmatpush1.msra.mxu0 0.0
  %338 = vmatprep.subr.mxu0 0.0
  %339 = vmatpush1.msra.mxu0 0.0
  %340 = vmatprep.subr.mxu0 0.0
  %341 = vmatpush1.msra.mxu0 0.0
  %342 = vmatprep.subr.mxu0 0.0
  %343 = vmatpush1.msra.mxu0 0.0
  %344 = vmatprep.subr.mxu0 0.0
  %345 = vmatpush1.msra.mxu0 0.0
  %346 = vmatprep.subr.mxu0 0.0
  %347 = vmatpush1.msra.mxu0 0.0
  %348 = vmatprep.subr.mxu0 0.0
  %349 = vmatpush1.msra.mxu0 0.0
  %350 = vmatprep.subr.mxu0 0.0
  %351 = vmatpush1.msra.mxu0 0.0
  %352 = vmatprep.subr.mxu0 0.0
  %353 = vmatpush1.msra.mxu0 0.0
  %354 = vmatprep.subr.mxu0 0.0
  %355 = vmatpush1.msra.mxu0 0.0
  %356 = vmatprep.subr.mxu0 0.0
  %357 = vmatpush1.msra.mxu0 0.0
  %358 = vmatprep.subr.mxu0 0.0
  %359 = vmatpush1.msra.mxu0 0.0
  %360 = vmatprep.subr.mxu0 0.0
  %361 = vmatpush1.msra.mxu0 0.0
  %362 = vmatprep.subr.mxu0 0.0
  %363 = vmatpush1.msra.mxu0 0.0
  %364 = vmatprep.subr.mxu0 0.0
  %365 = vmatpush1.msra.mxu0 0.0
  %366 = vmatprep.subr.mxu0 0.0
  %367 = vmatpush1.msra.mxu0 0.0
  %368 = vmatprep.subr.mxu0 0.0
  %369 = vmatpush1.msra.mxu0 0.0
  %370 = vmatprep.subr.mxu0 0.0
  %371 = vmatpush1.msra.mxu0 0.0
  %372 = vmatprep.subr.mxu0 0.0
  %373 = vmatpush1.msra.mxu0 0.0
  %374 = vmatprep.subr.mxu0 0.0
  %375 = vmatpush1.msra.mxu0 0.0
  %376 = vmatprep.mubr.f32.mxu0 0.0
  %v377 = vand.u32 %v56, 4294901760
  %v378 = vsub.f32 %v56, %v377
  %v379 = vand.u32 %v378, 4294901760
  %380 = vmatmul.mubr.f32.gmra.mrb[0].mxu0 %v379
  %v381 = vpop.f32.mrb[0].mxu0
  %v382 = vadd.f32 %v305, %v381
  %v383 = vpop.f32.mrb[0].mxu0
  %384 = vdwg.mxu0
  %385 = vmatprep.subr.mxu0 0.0
  %v386 = vand.u32 %v43, 4294901760
  %v387 = vsub.f32 %v43, %v386
  %v388 = vand.u32 %v387, 4294901760
  %389 = vmatpush1.msra.mxu0 %v388
  %390 = vmatprep.subr.mxu0 0.0
  %v391 = vand.u32 %v44, 4294901760
  %v392 = vsub.f32 %v44, %v391
  %v393 = vand.u32 %v392, 4294901760
  %394 = vmatpush1.msra.mxu0 %v393
  %395 = vmatprep.subr.mxu0 0.0
  %v396 = vand.u32 %v45, 4294901760
  %v397 = vsub.f32 %v45, %v396
  %v398 = vand.u32 %v397, 4294901760
  %399 = vmatpush1.msra.mxu0 %v398
  %400 = vmatprep.subr.mxu0 0.0
  %v401 = vand.u32 %v46, 4294901760
  %v402 = vsub.f32 %v46, %v401
  %v403 = vand.u32 %v402, 4294901760
  %404 = vmatpush1.msra.mxu0 %v403
  %405 = vmatprep.subr.mxu0 0.0
  %406 = vmatpush1.msra.mxu0 0.0
  %407 = vmatprep.subr.mxu0 0.0
  %408 = vmatpush1.msra.mxu0 0.0
  %409 = vmatprep.subr.mxu0 0.0
  %410 = vmatpush1.msra.mxu0 0.0
  %411 = vmatprep.subr.mxu0 0.0
  %412 = vmatpush1.msra.mxu0 0.0
  %413 = vmatprep.subr.mxu0 0.0
  %414 = vmatpush1.msra.mxu0 0.0
  %415 = vmatprep.subr.mxu0 0.0
  %416 = vmatpush1.msra.mxu0 0.0
  %417 = vmatprep.subr.mxu0 0.0
  %418 = vmatpush1.msra.mxu0 0.0
  %419 = vmatprep.subr.mxu0 0.0
  %420 = vmatpush1.msra.mxu0 0.0
  %421 = vmatprep.subr.mxu0 0.0
  %422 = vmatpush1.msra.mxu0 0.0
  %423 = vmatprep.subr.mxu0 0.0
  %424 = vmatpush1.msra.mxu0 0.0
  %425 = vmatprep.subr.mxu0 0.0
  %426 = vmatpush1.msra.mxu0 0.0
  %427 = vmatprep.subr.mxu0 0.0
  %428 = vmatpush1.msra.mxu0 0.0
  %429 = vmatprep.subr.mxu0 0.0
  %430 = vmatpush1.msra.mxu0 0.0
  %431 = vmatprep.subr.mxu0 0.0
  %432 = vmatpush1.msra.mxu0 0.0
  %433 = vmatprep.subr.mxu0 0.0
  %434 = vmatpush1.msra.mxu0 0.0
  %435 = vmatprep.subr.mxu0 0.0
  %436 = vmatpush1.msra.mxu0 0.0
  %437 = vmatprep.subr.mxu0 0.0
  %438 = vmatpush1.msra.mxu0 0.0
  %439 = vmatprep.subr.mxu0 0.0
  %440 = vmatpush1.msra.mxu0 0.0
  %441 = vmatprep.subr.mxu0 0.0
  %442 = vmatpush1.msra.mxu0 0.0
  %443 = vmatprep.subr.mxu0 0.0
  %444 = vmatpush1.msra.mxu0 0.0
  %445 = vmatprep.subr.mxu0 0.0
  %446 = vmatpush1.msra.mxu0 0.0
  %447 = vmatprep.subr.mxu0 0.0
  %448 = vmatpush1.msra.mxu0 0.0
  %449 = vmatprep.subr.mxu0 0.0
  %450 = vmatpush1.msra.mxu0 0.0
  %451 = vmatprep.subr.mxu0 0.0
  %452 = vmatpush1.msra.mxu0 0.0
  %453 = vmatprep.subr.mxu0 0.0
  %454 = vmatpush1.msra.mxu0 0.0
  %455 = vmatprep.subr.mxu0 0.0
  %456 = vmatpush1.msra.mxu0 0.0
  %457 = vmatprep.subr.mxu0 0.0
  %458 = vmatpush1.msra.mxu0 0.0
  %459 = vmatprep.subr.mxu0 0.0
  %460 = vmatpush1.msra.mxu0 0.0
  %461 = vmatprep.mubr.f32.mxu0 0.0
  %v462 = vand.u32 %v56, 4294901760
  %463 = vmatmul.mubr.f32.gmra.mrb[0].mxu0 %v462
  %v464 = vpop.f32.mrb[0].mxu0
  %v465 = vadd.f32 %v382, %v464
  %v466 = vpop.f32.mrb[0].mxu0
  %467 = vdwg.mxu0
  %468 = vmatprep.subr.mxu0 0.0
  %v469 = vand.u32 %v43, 4294901760
  %470 = vmatpush1.msra.mxu0 %v469
  %471 = vmatprep.subr.mxu0 0.0
  %v472 = vand.u32 %v44, 4294901760
  %473 = vmatpush1.msra.mxu0 %v472
  %474 = vmatprep.subr.mxu0 0.0
  %v475 = vand.u32 %v45, 4294901760
  %476 = vmatpush1.msra.mxu0 %v475
  %477 = vmatprep.subr.mxu0 0.0
  %v478 = vand.u32 %v46, 4294901760
  %479 = vmatpush1.msra.mxu0 %v478
  %480 = vmatprep.subr.mxu0 0.0
  %481 = vmatpush1.msra.mxu0 0.0
  %482 = vmatprep.subr.mxu0 0.0
  %483 = vmatpush1.msra.mxu0 0.0
  %484 = vmatprep.subr.mxu0 0.0
  %485 = vmatpush1.msra.mxu0 0.0
  %486 = vmatprep.subr.mxu0 0.0
  %487 = vmatpush1.msra.mxu0 0.0
  %488 = vmatprep.subr.mxu0 0.0
  %489 = vmatpush1.msra.mxu0 0.0
  %490 = vmatprep.subr.mxu0 0.0
  %491 = vmatpush1.msra.mxu0 0.0
  %492 = vmatprep.subr.mxu0 0.0
  %493 = vmatpush1.msra.mxu0 0.0
  %494 = vmatprep.subr.mxu0 0.0
  %495 = vmatpush1.msra.mxu0 0.0
  %496 = vmatprep.subr.mxu0 0.0
  %497 = vmatpush1.msra.mxu0 0.0
  %498 = vmatprep.subr.mxu0 0.0
  %499 = vmatpush1.msra.mxu0 0.0
  %500 = vmatprep.subr.mxu0 0.0
  %501 = vmatpush1.msra.mxu0 0.0
  %502 = vmatprep.subr.mxu0 0.0
  %503 = vmatpush1.msra.mxu0 0.0
  %504 = vmatprep.subr.mxu0 0.0
  %505 = vmatpush1.msra.mxu0 0.0
  %506 = vmatprep.subr.mxu0 0.0
  %507 = vmatpush1.msra.mxu0 0.0
  %508 = vmatprep.subr.mxu0 0.0
  %509 = vmatpush1.msra.mxu0 0.0
  %510 = vmatprep.subr.mxu0 0.0
  %511 = vmatpush1.msra.mxu0 0.0
  %512 = vmatprep.subr.mxu0 0.0
  %513 = vmatpush1.msra.mxu0 0.0
  %514 = vmatprep.subr.mxu0 0.0
  %515 = vmatpush1.msra.mxu0 0.0
  %516 = vmatprep.subr.mxu0 0.0
  %517 = vmatpush1.msra.mxu0 0.0
  %518 = vmatprep.subr.mxu0 0.0
  %519 = vmatpush1.msra.mxu0 0.0
  %520 = vmatprep.subr.mxu0 0.0
  %521 = vmatpush1.msra.mxu0 0.0
  %522 = vmatprep.subr.mxu0 0.0
  %523 = vmatpush1.msra.mxu0 0.0
  %524 = vmatprep.subr.mxu0 0.0
  %525 = vmatpush1.msra.mxu0 0.0
  %526 = vmatprep.subr.mxu0 0.0
  %527 = vmatpush1.msra.mxu0 0.0
  %528 = vmatprep.subr.mxu0 0.0
  %529 = vmatpush1.msra.mxu0 0.0
  %530 = vmatprep.subr.mxu0 0.0
  %531 = vmatpush1.msra.mxu0 0.0
  %532 = vmatprep.subr.mxu0 0.0
  %533 = vmatpush1.msra.mxu0 0.0
  %534 = vmatprep.subr.mxu0 0.0
  %535 = vmatpush1.msra.mxu0 0.0
  %536 = vmatprep.mubr.f32.mxu0 0.0
  %v537 = vand.u32 %v56, 4294901760
  %538 = vmatmul.mubr.f32.gmra.mrb[0].mxu0 %v537
  %v539 = vpop.f32.mrb[0].mxu0
  %v540 = vadd.f32 %v465, %v539
  %v541 = vpop.f32.mrb[0].mxu0
  %542 = vdwg.mxu0
  %v543 = vsub.f32 0.0, %v540
  %v544 = vmul.f32 %v543, 1.442695
  %v545 = vpow.pop %v544
  %vm546 = vcmask 39936
  %v547 = vsel %vm546, %v545, 0.0
  %548 = vadd.xlane.f32.xlu0 %v547
  %v549 = vpop.xlane.xlu0 %548
  %v550 = vadd.f32 %v549, 1e-10
  %v551 = vrcp.pop %v550
  %v552 = vmul.f32 %v545, %v551
  %v553 = vpack.c.bf16 %v35, %v35
  %v554 = vld [vmem:[%s3] sm:$0xff]
  %v555 = vld [vmem:[%s3 + $0x8] sm:$0xf]
  %v556 = vld [vmem:[%s3 + $0xc] sm:$0xff]
  %v557 = vld [vmem:[%s3 + $0x14] sm:$0xf]
  %v558 = vld [vmem:[%s4] sm:$0x7]
  %v560 = vlaneseq
  %v561 = vshrl.u32 %v560, 7
  %v562 = vsub.s32 0, %v561
  %v563 = vrot.slane %v558, %v562
  %v564 = vlaneseq
  %v565 = vshrl.u32 %v564, 7
  %v566 = vsub.s32 1, %v565
  %v567 = vrot.slane %v558, %v566
  %v568 = vlaneseq
  %v569 = vshrl.u32 %v568, 7
  %v570 = vsub.s32 2, %v569
  %v571 = vrot.slane %v558, %v570
  %v579 = vunpack.c.l.b16 %v554
  %v580 = vunpack.c.h.b16 %v554
  %v581 = vunpack.c.l.b16 %v555
  %v582 = vunpack.c.l.b16 %v556
  %v583 = vunpack.c.h.b16 %v556
  %v584 = vunpack.c.l.b16 %v557
  %v585 = vpack.c.b16 %v582, %v579
  %v586 = vpack.c.b16 %v583, %v580
  %v587 = vpack.c.b16 %v584, %v581
  %v592 = vsel %vm41, %v553, 0
  %594 = vmatprep.subr.bf16.mxu0 %v586
  %595 = vmatpush1.bf16.msra.mxu0 %v585
  %596 = vmatprep.subr.bf16.mxu0 0
  %597 = vmatpush1.bf16.msra.mxu0 0
  %598 = vmatprep.subr.bf16.mxu0 0
  %599 = vmatpush1.bf16.msra.mxu0 0
  %600 = vmatprep.subr.bf16.mxu0 0
  %601 = vmatpush1.bf16.msra.mxu0 0
  %602 = vmatprep.subr.bf16.mxu0 0
  %603 = vmatpush1.bf16.msra.mxu0 0
  %604 = vmatprep.subr.bf16.mxu0 0
  %605 = vmatpush1.bf16.msra.mxu0 0
  %606 = vmatprep.subr.bf16.mxu0 0
  %607 = vmatpush1.bf16.msra.mxu0 0
  %608 = vmatprep.subr.bf16.mxu0 0
  %609 = vmatpush1.bf16.msra.mxu0 0
  %610 = vmatprep.subr.bf16.mxu0 0
  %611 = vmatpush1.bf16.msra.mxu0 0
  %612 = vmatprep.subr.bf16.mxu0 0
  %613 = vmatpush1.bf16.msra.mxu0 0
  %614 = vmatprep.subr.bf16.mxu0 0
  %615 = vmatpush1.bf16.msra.mxu0 0
  %616 = vmatprep.subr.bf16.mxu0 0
  %617 = vmatpush1.bf16.msra.mxu0 0
  %618 = vmatprep.subr.bf16.mxu0 0
  %619 = vmatpush1.bf16.msra.mxu0 0
  %620 = vmatprep.subr.bf16.mxu0 0
  %621 = vmatpush1.bf16.msra.mxu0 0
  %622 = vmatprep.subr.bf16.mxu0 0
  %623 = vmatpush1.bf16.msra.mxu0 0
  %624 = vmatprep.subr.bf16.mxu0 0
  %625 = vmatpush1.bf16.msra.mxu0 0
  %626 = vmatprep.mubr.bf16.mxu0 0
  %627 = vmatmul.mubr.bf16.gmra.mrb[0].mxu0 %v592
  %v628 = vpop.f32.mrb[0].mxu0
  %v629 = vadd.f32 %v563, %v628
  %v630 = vpop.f32.mrb[0].mxu0
  %v631 = vadd.f32 %v567, %v630
  %v632 = vpop.f32.mrb[0].mxu0
  %v633 = vpop.f32.mrb[0].mxu0
  %634 = vdwg.mxu0
  %635 = vmatprep.subr.bf16.mxu0 0
  %636 = vmatpush1.bf16.msra.mxu0 %v587
  %637 = vmatprep.subr.bf16.mxu0 0
  %638 = vmatpush1.bf16.msra.mxu0 0
  %639 = vmatprep.subr.bf16.mxu0 0
  %640 = vmatpush1.bf16.msra.mxu0 0
  %641 = vmatprep.subr.bf16.mxu0 0
  %642 = vmatpush1.bf16.msra.mxu0 0
  %643 = vmatprep.subr.bf16.mxu0 0
  %644 = vmatpush1.bf16.msra.mxu0 0
  %645 = vmatprep.subr.bf16.mxu0 0
  %646 = vmatpush1.bf16.msra.mxu0 0
  %647 = vmatprep.subr.bf16.mxu0 0
  %648 = vmatpush1.bf16.msra.mxu0 0
  %649 = vmatprep.subr.bf16.mxu0 0
  %650 = vmatpush1.bf16.msra.mxu0 0
  %651 = vmatprep.subr.bf16.mxu0 0
  %652 = vmatpush1.bf16.msra.mxu0 0
  %653 = vmatprep.subr.bf16.mxu0 0
  %654 = vmatpush1.bf16.msra.mxu0 0
  %655 = vmatprep.subr.bf16.mxu0 0
  %656 = vmatpush1.bf16.msra.mxu0 0
  %657 = vmatprep.subr.bf16.mxu0 0
  %658 = vmatpush1.bf16.msra.mxu0 0
  %659 = vmatprep.subr.bf16.mxu0 0
  %660 = vmatpush1.bf16.msra.mxu0 0
  %661 = vmatprep.subr.bf16.mxu0 0
  %662 = vmatpush1.bf16.msra.mxu0 0
  %663 = vmatprep.subr.bf16.mxu0 0
  %664 = vmatpush1.bf16.msra.mxu0 0
  %665 = vmatprep.subr.bf16.mxu0 0
  %666 = vmatpush1.bf16.msra.mxu0 0
  %667 = vmatprep.mubr.bf16.mxu0 0
  %668 = vmatmul.mubr.bf16.gmra.mrb[0].mxu0 %v592
  %v669 = vpop.f32.mrb[0].mxu0
  %v670 = vadd.f32 %v571, %v669
  %v671 = vpop.f32.mrb[0].mxu0
  %v672 = vpop.f32.mrb[0].mxu0
  %v673 = vpop.f32.mrb[0].mxu0
  %674 = vdwg.mxu0
  %v675 = vmax.f32 %v629, 0.0
  %v676 = vmax.f32 %v631, 0.0
  %v677 = vmul.f32 %v552, %v670
  %v678 = vsel %vm546, %v677, 0.0
  %679 = vadd.xlane.f32.xlu0 %v678
  %v680 = vpop.xlane.xlu0 %679
  %v681 = vpack.c.bf16 %v675, %v675
  %v682 = vpack.c.bf16 %v676, %v676
  %v683 = vld [vmem:[%s5] sm:$0xf]
  %v684 = vld [vmem:[%s5 + $0x4] sm:$0xf]
  %v685 = vld [vmem:[%s5 + $0x8] sm:$0xf]
  %v686 = vld [vmem:[%s5 + $0xc] sm:$0xf]
  %v687 = vld [vmem:[%s5 + $0x10] sm:$0xf]
  %v688 = vld [vmem:[%s5 + $0x14] sm:$0xf]
  %v689 = vld [vmem:[%s5 + $0x18] sm:$0xf]
  %v690 = vld [vmem:[%s5 + $0x1c] sm:$0xf]
  %v691 = vld [vmem:[%s5 + $0x20] sm:$0xf]
  %v692 = vld [vmem:[%s5 + $0x24] sm:$0xf]
  %v693 = vld [vmem:[%s5 + $0x28] sm:$0xf]
  %v694 = vld [vmem:[%s5 + $0x2c] sm:$0xf]
  %v695 = vld [vmem:[%s5 + $0x30] sm:$0xf]
  %v696 = vld [vmem:[%s5 + $0x34] sm:$0xf]
  %v697 = vld [vmem:[%s5 + $0x38] sm:$0xf]
  %v698 = vld [vmem:[%s5 + $0x3c] sm:$0xf]
  %v699 = vld [vmem:[%s5 + $0x40] sm:$0xf]
  %v700 = vld [vmem:[%s5 + $0x44] sm:$0xf]
  %v701 = vld [vmem:[%s5 + $0x48] sm:$0xf]
  %v702 = vld [vmem:[%s5 + $0x4c] sm:$0xf]
  %v703 = vld [vmem:[%s5 + $0x50] sm:$0xf]
  %v704 = vld [vmem:[%s5 + $0x54] sm:$0xf]
  %v705 = vld [vmem:[%s5 + $0x58] sm:$0xf]
  %v706 = vld [vmem:[%s5 + $0x5c] sm:$0xf]
  %v707 = vld [vmem:[%s5 + $0x60] sm:$0xf]
  %v708 = vld [vmem:[%s5 + $0x64] sm:$0xf]
  %v709 = vld [vmem:[%s5 + $0x68] sm:$0xf]
  %v710 = vld [vmem:[%s5 + $0x6c] sm:$0xf]
  %v711 = vld [vmem:[%s5 + $0x70] sm:$0xf]
  %v712 = vld [vmem:[%s5 + $0x74] sm:$0xf]
  %v713 = vld [vmem:[%s5 + $0x78] sm:$0xf]
  %v714 = vld [vmem:[%s5 + $0x7c] sm:$0xf]
  %v715 = vld [vmem:[%s6] sm:$0x1]
  %v717 = vlaneseq
  %v718 = vshrl.u32 %v717, 7
  %v719 = vsub.s32 0, %v718
  %v720 = vrot.slane %v715, %v719
  %v754 = vunpack.c.l.b16 %v683
  %v755 = vunpack.c.l.b16 %v684
  %v756 = vunpack.c.l.b16 %v685
  %v757 = vunpack.c.l.b16 %v686
  %v758 = vunpack.c.l.b16 %v687
  %v759 = vunpack.c.l.b16 %v688
  %v760 = vunpack.c.l.b16 %v689
  %v761 = vunpack.c.l.b16 %v690
  %v762 = vunpack.c.l.b16 %v691
  %v763 = vunpack.c.l.b16 %v692
  %v764 = vunpack.c.l.b16 %v693
  %v765 = vunpack.c.l.b16 %v694
  %v766 = vunpack.c.l.b16 %v695
  %v767 = vunpack.c.l.b16 %v696
  %v768 = vunpack.c.l.b16 %v697
  %v769 = vunpack.c.l.b16 %v698
  %v770 = vunpack.c.l.b16 %v699
  %v771 = vunpack.c.l.b16 %v700
  %v772 = vunpack.c.l.b16 %v701
  %v773 = vunpack.c.l.b16 %v702
  %v774 = vunpack.c.l.b16 %v703
  %v775 = vunpack.c.l.b16 %v704
  %v776 = vunpack.c.l.b16 %v705
  %v777 = vunpack.c.l.b16 %v706
  %v778 = vunpack.c.l.b16 %v707
  %v779 = vunpack.c.l.b16 %v708
  %v780 = vunpack.c.l.b16 %v709
  %v781 = vunpack.c.l.b16 %v710
  %v782 = vunpack.c.l.b16 %v711
  %v783 = vunpack.c.l.b16 %v712
  %v784 = vunpack.c.l.b16 %v713
  %v785 = vunpack.c.l.b16 %v714
  %v786 = vpack.c.b16 %v755, %v754
  %v787 = vpack.c.b16 %v757, %v756
  %v788 = vpack.c.b16 %v759, %v758
  %v789 = vpack.c.b16 %v761, %v760
  %v790 = vpack.c.b16 %v763, %v762
  %v791 = vpack.c.b16 %v765, %v764
  %v792 = vpack.c.b16 %v767, %v766
  %v793 = vpack.c.b16 %v769, %v768
  %v794 = vpack.c.b16 %v771, %v770
  %v795 = vpack.c.b16 %v773, %v772
  %v796 = vpack.c.b16 %v775, %v774
  %v797 = vpack.c.b16 %v777, %v776
  %v798 = vpack.c.b16 %v779, %v778
  %v799 = vpack.c.b16 %v781, %v780
  %v800 = vpack.c.b16 %v783, %v782
  %v801 = vpack.c.b16 %v785, %v784
  %818 = vmatprep.subr.bf16.mxu0 0
  %819 = vmatpush1.bf16.msra.mxu0 %v786
  %820 = vmatprep.subr.bf16.mxu0 0
  %821 = vmatpush1.bf16.msra.mxu0 %v787
  %822 = vmatprep.subr.bf16.mxu0 0
  %823 = vmatpush1.bf16.msra.mxu0 %v788
  %824 = vmatprep.subr.bf16.mxu0 0
  %825 = vmatpush1.bf16.msra.mxu0 %v789
  %826 = vmatprep.subr.bf16.mxu0 0
  %827 = vmatpush1.bf16.msra.mxu0 %v790
  %828 = vmatprep.subr.bf16.mxu0 0
  %829 = vmatpush1.bf16.msra.mxu0 %v791
  %830 = vmatprep.subr.bf16.mxu0 0
  %831 = vmatpush1.bf16.msra.mxu0 %v792
  %832 = vmatprep.subr.bf16.mxu0 0
  %833 = vmatpush1.bf16.msra.mxu0 %v793
  %834 = vmatprep.subr.bf16.mxu0 0
  %835 = vmatpush1.bf16.msra.mxu0 %v794
  %836 = vmatprep.subr.bf16.mxu0 0
  %837 = vmatpush1.bf16.msra.mxu0 %v795
  %838 = vmatprep.subr.bf16.mxu0 0
  %839 = vmatpush1.bf16.msra.mxu0 %v796
  %840 = vmatprep.subr.bf16.mxu0 0
  %841 = vmatpush1.bf16.msra.mxu0 %v797
  %842 = vmatprep.subr.bf16.mxu0 0
  %843 = vmatpush1.bf16.msra.mxu0 %v798
  %844 = vmatprep.subr.bf16.mxu0 0
  %845 = vmatpush1.bf16.msra.mxu0 %v799
  %846 = vmatprep.subr.bf16.mxu0 0
  %847 = vmatpush1.bf16.msra.mxu0 %v800
  %848 = vmatprep.subr.bf16.mxu0 0
  %849 = vmatpush1.bf16.msra.mxu0 %v801
  %850 = vmatprep.mubr.bf16.mxu0 %v682
  %851 = vmatmul.mubr.bf16.gmra.mrb[0].mxu0 %v681
  %v852 = vpop.f32.mrb[0].mxu0
  %v853 = vadd.f32 %v720, %v852
  %v854 = vpop.f32.mrb[0].mxu0
  %v855 = vpop.f32.mrb[0].mxu0
  %v856 = vpop.f32.mrb[0].mxu0
  %857 = vdwg.mxu0
  %v858 = vmax.f32 %v853, 0.0
  %v859 = vpack.c.bf16 %v858, %v858
  %v860 = vld [vmem:[%s7] sm:$0xf]
  %v861 = vld [vmem:[%s7 + $0x4] sm:$0xf]
  %v862 = vld [vmem:[%s7 + $0x8] sm:$0xf]
  %v863 = vld [vmem:[%s7 + $0xc] sm:$0xf]
  %v864 = vld [vmem:[%s7 + $0x10] sm:$0xf]
  %v865 = vld [vmem:[%s7 + $0x14] sm:$0xf]
  %v866 = vld [vmem:[%s7 + $0x18] sm:$0xf]
  %v867 = vld [vmem:[%s7 + $0x1c] sm:$0xf]
  %v868 = vld [vmem:[%s7 + $0x20] sm:$0xf]
  %v869 = vld [vmem:[%s7 + $0x24] sm:$0xf]
  %v870 = vld [vmem:[%s7 + $0x28] sm:$0xf]
  %v871 = vld [vmem:[%s7 + $0x2c] sm:$0xf]
  %v872 = vld [vmem:[%s7 + $0x30] sm:$0xf]
  %v873 = vld [vmem:[%s7 + $0x34] sm:$0xf]
  %v874 = vld [vmem:[%s7 + $0x38] sm:$0xf]
  %v875 = vld [vmem:[%s7 + $0x3c] sm:$0xf]
  %v876 = vld [vmem:[#allocation2] sm:$0x1]
  %v878 = vlaneseq
  %v879 = vshrl.u32 %v878, 7
  %v880 = vsub.s32 0, %v879
  %v881 = vrot.slane %v876, %v880
  %v899 = vunpack.c.l.b16 %v860
  %v900 = vunpack.c.l.b16 %v861
  %v901 = vunpack.c.l.b16 %v862
  %v902 = vunpack.c.l.b16 %v863
  %v903 = vunpack.c.l.b16 %v864
  %v904 = vunpack.c.l.b16 %v865
  %v905 = vunpack.c.l.b16 %v866
  %v906 = vunpack.c.l.b16 %v867
  %v907 = vunpack.c.l.b16 %v868
  %v908 = vunpack.c.l.b16 %v869
  %v909 = vunpack.c.l.b16 %v870
  %v910 = vunpack.c.l.b16 %v871
  %v911 = vunpack.c.l.b16 %v872
  %v912 = vunpack.c.l.b16 %v873
  %v913 = vunpack.c.l.b16 %v874
  %v914 = vunpack.c.l.b16 %v875
  %v915 = vpack.c.b16 %v900, %v899
  %v916 = vpack.c.b16 %v902, %v901
  %v917 = vpack.c.b16 %v904, %v903
  %v918 = vpack.c.b16 %v906, %v905
  %v919 = vpack.c.b16 %v908, %v907
  %v920 = vpack.c.b16 %v910, %v909
  %v921 = vpack.c.b16 %v912, %v911
  %v922 = vpack.c.b16 %v914, %v913
  %931 = vmatprep.subr.bf16.mxu0 0
  %932 = vmatpush1.bf16.msra.mxu0 %v915
  %933 = vmatprep.subr.bf16.mxu0 0
  %934 = vmatpush1.bf16.msra.mxu0 %v916
  %935 = vmatprep.subr.bf16.mxu0 0
  %936 = vmatpush1.bf16.msra.mxu0 %v917
  %937 = vmatprep.subr.bf16.mxu0 0
  %938 = vmatpush1.bf16.msra.mxu0 %v918
  %939 = vmatprep.subr.bf16.mxu0 0
  %940 = vmatpush1.bf16.msra.mxu0 %v919
  %941 = vmatprep.subr.bf16.mxu0 0
  %942 = vmatpush1.bf16.msra.mxu0 %v920
  %943 = vmatprep.subr.bf16.mxu0 0
  %944 = vmatpush1.bf16.msra.mxu0 %v921
  %945 = vmatprep.subr.bf16.mxu0 0
  %946 = vmatpush1.bf16.msra.mxu0 %v922
  %947 = vmatprep.subr.bf16.mxu0 0
  %948 = vmatpush1.bf16.msra.mxu0 0
  %949 = vmatprep.subr.bf16.mxu0 0
  %950 = vmatpush1.bf16.msra.mxu0 0
  %951 = vmatprep.subr.bf16.mxu0 0
  %952 = vmatpush1.bf16.msra.mxu0 0
  %953 = vmatprep.subr.bf16.mxu0 0
  %954 = vmatpush1.bf16.msra.mxu0 0
  %955 = vmatprep.subr.bf16.mxu0 0
  %956 = vmatpush1.bf16.msra.mxu0 0
  %957 = vmatprep.subr.bf16.mxu0 0
  %958 = vmatpush1.bf16.msra.mxu0 0
  %959 = vmatprep.subr.bf16.mxu0 0
  %960 = vmatpush1.bf16.msra.mxu0 0
  %961 = vmatprep.subr.bf16.mxu0 0
  %962 = vmatpush1.bf16.msra.mxu0 0
  %963 = vmatprep.mubr.bf16.mxu0 0
  %964 = vmatmul.mubr.bf16.gmra.mrb[0].mxu0 %v859
  %v965 = vpop.f32.mrb[0].mxu0
  %v966 = vadd.f32 %v881, %v965
  %v967 = vpop.f32.mrb[0].mxu0
  %v968 = vpop.f32.mrb[0].mxu0
  %v969 = vpop.f32.mrb[0].mxu0
  %970 = vdwg.mxu0
  %v971 = vadd.f32 %v680, %v966
  %vm972 = vcmask 7168
  %973 = vst.msk [vmem:[%s9] sm:$0xff] %vm972, %v971
  // Predicated region
  $region38: #{hybrid_forward.1} parent=0 // pred_check
    _
  $region39: #{hybrid_forward.1} parent=0 // pred_check_branch
    %975 = sbr.rel (0) target = $region41
  $region40: #{hybrid_forward.1} parent=0 // pred_region
    _
  $region41: #{hybrid_forward.1} parent=0 // pred_fallthru
    _
  // Predicated region
  $region42: #{hybrid_forward.1} parent=0 // pred_check
    _
  $region43: #{hybrid_forward.1} parent=0 // pred_check_branch
    %977 = sbr.rel (0) target = $region45
  $region44: #{hybrid_forward.1} parent=0 // pred_region
    _
  $region45: #{hybrid_forward.1} parent=0 // pred_fallthru
    _

</llo_original>
